<compile_context>
chip_gen: v6e
topology: v6e:2x2x1
jax: 0.10.0
libtpu: 0.0.40
codegen_flags: <defaults>
</compile_context>

<pallas_src>
import jax
import jax.numpy as jnp
from jax.experimental import pallas as pl
from jax.experimental.pallas import tpu as pltpu

_LANE = 128


def _vmem_capacity_bytes():
    try:
        return int(pltpu.get_tpu_info().vmem_capacity_bytes)
    except Exception:
        return 64 * 1024 * 1024  # conservative fallback (v7x per-TC VMEM)


def pos_emb_kernel(x_ref, pe_ref, o_ref):
    # x_ref / pe_ref / o_ref: (tile_d, tile_t).  Pure VPU elementwise add.
    o_ref[...] = x_ref[...] + pe_ref[...]


def pos_emb(x, pos_embeddings, *, max_block_bytes=None):
    """x: (B, d_model, n_tokens); pos_embeddings: (1, d_model, n_tokens)."""
    B, d_model, n_tokens = x.shape
    assert pos_embeddings.shape == (1, d_model, n_tokens)

    # Squeeze the leading unit dim (layout-free) and match x's dtype.
    pe = pos_embeddings.reshape(d_model, n_tokens).astype(x.dtype)

    itemsize = jnp.dtype(x.dtype).itemsize
    sublane = max(8, 32 // itemsize)  # f32 -> 8, bf16 -> 16, int8/fp8 -> 32

    # Generation-aware budgets (v5e/v6e: 128 MiB VMEM; v7x: 64 MiB per TC).
    vmem_cap = _vmem_capacity_bytes()
    vmem_limit = min(vmem_cap // 2, 64 * 1024 * 1024)
    if max_block_bytes is None:
        max_block_bytes = max(256 * 1024, vmem_limit // 8)

    # Lane tile over n_tokens: take the full dim when it fits the budget with
    # `sublane` rows (or is <= one vreg of lanes); otherwise a multiple of 128.
    if n_tokens <= _LANE or n_tokens * sublane * itemsize <= max_block_bytes:
        tile_t = n_tokens
    else:
        lanes_budget = max_block_bytes // (sublane * itemsize)
        tile_t = max(_LANE, (lanes_budget // _LANE) * _LANE)
    grid_t = pl.cdiv(n_tokens, tile_t)

    # Sublane tile over d_model: full dim when it fits, else a sublane multiple.
    rows_budget = max(1, max_block_bytes // (tile_t * itemsize))
    if d_model <= max(rows_budget, sublane):
        tile_d = d_model
    else:
        tile_d = max(sublane, (rows_budget // sublane) * sublane)
    grid_d = pl.cdiv(d_model, tile_d)

    # Batch innermost: pe's block index is constant across it (fetched once per
    # (d, t) tile); the outer "parallel" axes are what megacore shards on v7x.
    grid = (grid_d, grid_t, B)
    batch_sem = "arbitrary" if grid_d * grid_t > 1 else "parallel"

    cost = pl.CostEstimate(
        flops=B * d_model * n_tokens,
        transcendentals=0,
        bytes_accessed=(2 * B + 1) * d_model * n_tokens * itemsize,
    )

    return pl.pallas_call(
        pos_emb_kernel,
        out_shape=jax.ShapeDtypeStruct((B, d_model, n_tokens), x.dtype),
        grid_spec=pltpu.PrefetchScalarGridSpec(
            num_scalar_prefetch=0,
            grid=grid,
            in_specs=[
                pl.BlockSpec((pl.Squeezed(), tile_d, tile_t),
                             lambda d, t, b: (b, d, t)),
                pl.BlockSpec((tile_d, tile_t), lambda d, t, b: (d, t)),
            ],
            out_specs=pl.BlockSpec((pl.Squeezed(), tile_d, tile_t),
                                   lambda d, t, b: (b, d, t)),
        ),
        compiler_params=pltpu.CompilerParams(
            dimension_semantics=("parallel", "parallel", batch_sem),
            vmem_limit_bytes=vmem_limit,
        ),
        cost_estimate=cost,
    )(x, pe)


if __name__ == "__main__":
    root_key = jax.random.PRNGKey(0)

    def run_case(key, B, d_model, n_tokens, dtype=jnp.float32, **kw):
        kx, kp = jax.random.split(key)
        x = jax.random.normal(kx, (B, d_model, n_tokens), dtype=dtype)
        # nn.Parameter(torch.zeros(...)) is zero-init; use non-zero values so
        # the broadcast add is actually exercised.
        pe = jax.random.normal(kp, (1, d_model, n_tokens), dtype=dtype)
        out = jax.block_until_ready(pos_emb(x, pe, **kw))
        ref = x + pe
        assert out.shape == x.shape
        tol = 1e-6 if dtype == jnp.float32 else 1e-2
        assert jnp.allclose(out, ref, atol=tol), (
            f"mismatch vs reference: B={B} d_model={d_model} "
            f"n_tokens={n_tokens} dtype={dtype}")

    keys = jax.random.split(root_key, 4)
    # Case 1: shapes consistent with the module test (batch=2, d_model=32, n_tokens=8).
    run_case(keys[0], 2, 32, 8)
    # Case 2: awkward small shape (neither dim sublane/lane aligned) — full-block path.
    run_case(keys[1], 2, 48, 12)
    # Case 3: force the tiled path (128-lane tiles, sublane row tiles, ragged
    #         d_model edge, pe reuse across batch) by shrinking the block budget.
    run_case(keys[2], 2, 44, 256, max_block_bytes=4096)
    # Case 4: bf16 (sublane packing 16) on the full-block path.
    run_case(keys[3], 2, 32, 8, dtype=jnp.bfloat16)

    print("KERNEL_OK")
</pallas_src>

<mosaic_0001>
module attributes {stable_mosaic.version = 11 : i64} {
  func.func @pos_emb_kernel(%arg0: i32, %arg1: i32, %arg2: i32, %arg3: memref<1x32x8xf32, #tpu.memory_space<vmem>>, %arg4: memref<32x8xf32, #tpu.memory_space<vmem>>, %arg5: memref<1x32x8xf32, #tpu.memory_space<vmem>>) attributes {dimension_semantics = [#tpu.dimension_semantics<parallel>, #tpu.dimension_semantics<parallel>, #tpu.dimension_semantics<parallel>], iteration_bounds = array<i64: 1, 1, 2>, scalar_prefetch = 0 : i64, scratch_operands = 0 : i64, tpu.core_type = #tpu.core_type<tc>, window_params = [{transform_indices = @transform_0, window_bounds = array<i64: 1, 32, 8>}, {transform_indices = @transform_1, window_bounds = array<i64: 32, 8>}, {transform_indices = @transform_2, window_bounds = array<i64: 1, 32, 8>}]} {
    %c0 = arith.constant 0 : index
    %c0_0 = arith.constant 0 : index
    %c0_1 = arith.constant 0 : index
    %0 = vector.load %arg3[%c0, %c0_0, %c0_1] : memref<1x32x8xf32, #tpu.memory_space<vmem>>, vector<1x32x8xf32>
    %1 = vector.shape_cast %0 : vector<1x32x8xf32> to vector<32x8xf32>
    %c0_2 = arith.constant 0 : index
    %c0_3 = arith.constant 0 : index
    %2 = vector.load %arg4[%c0_2, %c0_3] : memref<32x8xf32, #tpu.memory_space<vmem>>, vector<32x8xf32>
    %3 = arith.addf %1, %2 : vector<32x8xf32>
    %c0_4 = arith.constant 0 : index
    %c0_5 = arith.constant 0 : index
    %c0_6 = arith.constant 0 : index
    %4 = vector.load %arg5[%c0_4, %c0_5, %c0_6] : memref<1x32x8xf32, #tpu.memory_space<vmem>>, vector<1x32x8xf32>
    %5 = vector.shape_cast %4 : vector<1x32x8xf32> to vector<32x8xf32>
    %6 = vector.shape_cast %3 : vector<32x8xf32> to vector<1x32x8xf32>
    tpu.vector_store %arg5[%c0_4, %c0_5, %c0_6], %6 {strides = array<i32>} : memref<1x32x8xf32, #tpu.memory_space<vmem>>, vector<1x32x8xf32>,
    return
  }
  func.func @transform_0(%arg0: i32, %arg1: i32, %arg2: i32) -> (i32, i32, i32) {
    %c0_i32 = arith.constant 0 : i32
    return %arg2, %arg0, %arg1 : i32, i32, i32
  }
  func.func @transform_1(%arg0: i32, %arg1: i32, %arg2: i32) -> (i32, i32) {
    %c0_i32 = arith.constant 0 : i32
    return %arg0, %arg1 : i32, i32
  }
  func.func @transform_2(%arg0: i32, %arg1: i32, %arg2: i32) -> (i32, i32, i32) {
    %c0_i32 = arith.constant 0 : i32
    return %arg2, %arg0, %arg1 : i32, i32, i32
  }
}

</mosaic_0001>

<llo_original>
// kernel: tpu_custom_call.1
$region0: #{tpu_custom_call.1}
  #allocation0 [shape = 'u32[]', space=smem, size = 0x4, offset = 0x4, fixed_abs, tag = 'smem constant byte address 0x4 - core index']
  #allocation1 [shape = 'u32[144,128]{1,0:T(1,128)}', space=vmem, size = 0x12000, scoped, tag = 'internal scratch']
  %s0 = inlined_call_operand.vmem [shape: f32[2,32,8], index: 0, kind: input, shape index: {}]
  %s1 = inlined_call_operand.vmem [shape: f32[32,8], index: 1, kind: input, shape index: {}]
  %s2 = inlined_call_operand.vmem [shape: f32[2,32,8], index: 2, kind: output, shape index: {}]
  %s3 = sld [smem:[#allocation0]]
  $region41: #{tpu_custom_call.1} parent=0
    _
  %s5 = ssub.s32 1, %s3
  %s6 = scalar_select 0, %s5, %s3
  loop: start=0, step=1, limit=4
  $region2: #{tpu_custom_call.1} parent=0 // loop_pre_header
    _
  $region3: #{tpu_custom_call.1} parent=0 // loop_header
    %s8 = sphi 0, %s12
    %p9 = scmp.ge.s32.totalorder %s8, 4
    %s15 = sphi 0, %s34
    %s16 = sphi 0, %s30
    %s17 = sphi 0, %s26
    %s18 = sphi 0, %s15
    %s19 = sphi 0, %s16
    %s20 = sphi 0, %s17
    %s21 = sphi 0, %s18
    %s22 = sphi 0, %s19
    %s23 = sphi 0, %s20
    %s41 = sphi 0, %s43
    %s44 = sphi 0, %s41
    %s45 = sphi 0, %s44
    %s61 = sphi 0, %s45
    %s69 = sphi 0, %s71
    %s72 = sphi 0, %s69
    %s73 = sphi 0, %s72
    %s89 = sphi 0, %s73
    %s99 = sphi 0, %s101
    %s102 = sphi 0, %s99
    %s103 = sphi 0, %s102
    %s119 = sphi 0, %s103
  $region4: #{tpu_custom_call.1} parent=0 // loop_header_branch
    %11 = sbr.rel (%p9) target = $region8
  $region5: #{tpu_custom_call.1} parent=0 // loop_body
    %s13 = ssub.s32 %s8, 1
    %s14 = ssub.s32 %s8, 2
    %s24 = sadd.s32 1, %s17
    %p25 = scmp.ge.s32.totalorder %s24, 2
    %s26 = scalar_select %p25, 0, %s24
    %s27 = sadd.s32 1, %s16
    %s28 = scalar_select %p25, %s27, %s16
    %p29 = scmp.ge.s32.totalorder %s28, 1
    %s30 = scalar_select %p29, 0, %s28
    %s31 = sadd.s32 1, %s15
    %s32 = scalar_select %p29, %s31, %s15
    %p33 = scmp.ge.s32.totalorder %s32, 1
    %s34 = scalar_select %p33, 0, %s32
    %s35 = ssub.s32 %s17, %s26
    %s36 = ssub.s32 %s15, %s34
    %s37 = sor.u32 %s35, %s36
    %s38 = ssub.s32 %s16, %s30
    %s39 = sor.u32 %s37, %s38
    %p40 = scmp.eq.s32.totalorder %s39, 0
    %s42 = sadd.s32 %s41, 1
    %s43 = scalar_select %p40, %s41, %s42
    %p46 = pneg %p40
    %p47 = scmp.eq.s32.totalorder %s8, 1
    %p48 = por %p46, %p47
    %p49 = scmp.ne.s32.totalorder %s41, %s44
    %p50 = scmp.eq.s32.totalorder %s8, 0
    %p51 = por %p49, %p50
    %p52 = scmp.ne.s32.totalorder %s41, %s44
    %p53 = scmp.eq.s32.totalorder %s13, 1
    %p54 = por %p52, %p53
    %p55 = scmp.ne.s32.totalorder %s44, %s45
    %p56 = scmp.eq.s32.totalorder %s13, 0
    %p57 = por %p55, %p56
    %p58 = scmp.ne.s32.totalorder %s44, %s45
    %p59 = scmp.eq.s32.totalorder %s14, 1
    %p60 = por %p58, %p59
    %p62 = scmp.ne.s32.totalorder %s45, %s61
    %p63 = scmp.eq.s32.totalorder %s14, 0
    %p64 = por %p62, %p63
    %s65 = ssub.s32 %s15, %s34
    %s66 = ssub.s32 %s16, %s30
    %s67 = sor.u32 %s65, %s66
    %p68 = scmp.eq.s32.totalorder %s67, 0
    %s70 = sadd.s32 %s69, 1
    %s71 = scalar_select %p68, %s69, %s70
    %p74 = pneg %p68
    %p75 = scmp.eq.s32.totalorder %s8, 1
    %p76 = por %p74, %p75
    %p77 = scmp.ne.s32.totalorder %s69, %s72
    %p78 = scmp.eq.s32.totalorder %s8, 0
    %p79 = por %p77, %p78
    %p80 = scmp.ne.s32.totalorder %s69, %s72
    %p81 = scmp.eq.s32.totalorder %s13, 1
    %p82 = por %p80, %p81
    %p83 = scmp.ne.s32.totalorder %s72, %s73
    %p84 = scmp.eq.s32.totalorder %s13, 0
    %p85 = por %p83, %p84
    %p86 = scmp.ne.s32.totalorder %s72, %s73
    %p87 = scmp.eq.s32.totalorder %s14, 1
    %p88 = por %p86, %p87
    %p90 = scmp.ne.s32.totalorder %s73, %s89
    %p91 = scmp.eq.s32.totalorder %s14, 0
    %p92 = por %p90, %p91
    %s93 = ssub.s32 %s17, %s26
    %s94 = ssub.s32 %s15, %s34
    %s95 = sor.u32 %s93, %s94
    %s96 = ssub.s32 %s16, %s30
    %s97 = sor.u32 %s95, %s96
    %p98 = scmp.eq.s32.totalorder %s97, 0
    %s100 = sadd.s32 %s99, 1
    %s101 = scalar_select %p98, %s99, %s100
    %p104 = pneg %p98
    %p105 = scmp.eq.s32.totalorder %s8, 1
    %p106 = por %p104, %p105
    %p107 = scmp.ne.s32.totalorder %s99, %s102
    %p108 = scmp.eq.s32.totalorder %s8, 0
    %p109 = por %p107, %p108
    %p110 = scmp.ne.s32.totalorder %s99, %s102
    %p111 = scmp.eq.s32.totalorder %s13, 1
    %p112 = por %p110, %p111
    %p113 = scmp.ne.s32.totalorder %s102, %s103
    %p114 = scmp.eq.s32.totalorder %s13, 0
    %p115 = por %p113, %p114
    %p116 = scmp.ne.s32.totalorder %s102, %s103
    %p117 = scmp.eq.s32.totalorder %s14, 1
    %p118 = por %p116, %p117
    %p120 = scmp.ne.s32.totalorder %s103, %s119
    %p121 = scmp.eq.s32.totalorder %s14, 0
    %p122 = por %p120, %p121
    %p123 = scmp.le.s32.totalorder 1, %s8
    %p124 = scmp.lt.s32.totalorder %s8, 3
    %p125 = pnand %p123, %p124
    %p126 = pneg %p125
    // Predicated region
    $region9: #{tpu_custom_call.1} parent=5 // pred_check
      _
    $region10: #{tpu_custom_call.1} parent=5 // pred_check_branch
      %128 = sbr.rel (%p125) target = $region12
    $region11: #{tpu_custom_call.1} parent=5 // pred_region
      %s129 = ssub.s32 %s8, 1
      // Predicated region
      $region13: #{tpu_custom_call.1} parent=11 // pred_check
        %p130 = pneg %p85
      $region14: #{tpu_custom_call.1} parent=11 // pred_check_branch
        %132 = sbr.rel (%p130) target = $region16
      $region15: #{tpu_custom_call.1} parent=11 // pred_region
        %s133 = smul.u32 4, %s18
        %p134 = scmp.lt.s32.totalorder %s133, 3
        %s135 = scalar_select %p134, %s133, 3
        %p136 = scmp.lt.s32.totalorder %s19, 0
        %s137 = scalar_select %p136, %s19, 0
        %s138 = sadd.s32 %s137, %s135
        %s139 = smul.addr %s138, 8
        %s140 = scalar_lea.vmem %s1, %s139
        %s141 = smul.u32 4, %s18
      $region16: #{tpu_custom_call.1} parent=11 // pred_fallthru
        _
    $region12: #{tpu_custom_call.1} parent=5 // pred_fallthru
      _
    %p142 = scmp.lt.s32.totalorder %s8, 2
    // Predicated region
    $region17: #{tpu_custom_call.1} parent=5 // pred_check
      %p143 = pneg %p142
    $region18: #{tpu_custom_call.1} parent=5 // pred_check_branch
      %145 = sbr.rel (%p143) target = $region20
    $region19: #{tpu_custom_call.1} parent=5 // pred_region
      // Predicated region
      $region21: #{tpu_custom_call.1} parent=19 // pred_check
        %p146 = pneg %p51
      $region22: #{tpu_custom_call.1} parent=19 // pred_check_branch
        %148 = sbr.rel (%p146) target = $region24
      $region23: #{tpu_custom_call.1} parent=19 // pred_region
        %s149 = smul.u32 4, %s15
        %p150 = scmp.lt.s32.totalorder %s17, 1
        %s151 = scalar_select %p150, %s17, 1
        %p152 = scmp.lt.s32.totalorder %s149, 3
        %s153 = scalar_select %p152, %s149, 3
        %p154 = scmp.lt.s32.totalorder %s16, 0
        %s155 = scalar_select %p154, %s16, 0
        %s156 = sadd.s32 %s155, %s153
        %s157 = smul.addr %s151, 4
        %s158 = sadd.s32 %s156, %s157
        %s159 = smul.addr %s158, 8
        %s160 = scalar_lea.vmem %s0, %s159
        %s161 = smul.u32 4, %s15
      $region24: #{tpu_custom_call.1} parent=19 // pred_fallthru
        _
    $region20: #{tpu_custom_call.1} parent=5 // pred_fallthru
      _
    %p162 = scmp.le.s32.totalorder 1, %s8
    %p163 = scmp.lt.s32.totalorder %s8, 3
    %p164 = pnand %p162, %p163
    %p165 = pneg %p164
    // Predicated region
    $region25: #{tpu_custom_call.1} parent=5 // pred_check
      _
    $region26: #{tpu_custom_call.1} parent=5 // pred_check_branch
      %167 = sbr.rel (%p164) target = $region28
    $region27: #{tpu_custom_call.1} parent=5 // pred_region
      %s168 = ssub.s32 %s8, 1
      %s169 = smul.u32 4, %s18
      %p170 = scmp.lt.s32.totalorder %s20, 1
      %s171 = scalar_select %p170, %s20, 1
      %p172 = scmp.lt.s32.totalorder %s169, 3
      %s173 = scalar_select %p172, %s169, 3
      %p174 = scmp.lt.s32.totalorder %s19, 0
      %s175 = scalar_select %p174, %s19, 0
      %s176 = sadd.s32 %s175, %s173
      %s177 = smul.addr %s171, 4
      %s178 = sadd.s32 %s176, %s177
      %s179 = smul.addr %s178, 8
      %s180 = scalar_lea.vmem %s0, %s179
      %p181 = pneg %p57
      %p182 = pneg %p54
      %s183 = smul.u32 4, %s18
      %p184 = scmp.lt.s32.totalorder %s183, 3
      %s185 = scalar_select %p184, %s183, 3
      %p186 = scmp.lt.s32.totalorder %s19, 0
      %s187 = scalar_select %p186, %s19, 0
      %s188 = sadd.s32 %s187, %s185
      %s189 = smul.addr %s188, 8
      %s190 = scalar_lea.vmem %s1, %s189
      %p191 = pneg %p85
      %p192 = pneg %p82
      %p193 = pneg %p115
      %p194 = pneg %p112
      %s195 = smul.u32 4, %s18
      %p196 = scmp.lt.s32.totalorder %s20, 1
      %s197 = scalar_select %p196, %s20, 1
      %p198 = scmp.lt.s32.totalorder %s195, 3
      %s199 = scalar_select %p198, %s195, 3
      %p200 = scmp.lt.s32.totalorder %s19, 0
      %s201 = scalar_select %p200, %s19, 0
      %s202 = sadd.s32 %s201, %s199
      %s203 = smul.addr %s197, 4
      %s204 = sadd.s32 %s202, %s203
      %s205 = smul.addr %s204, 8
      %s206 = scalar_lea.vmem %s2, %s205
      %s207 = smul.u32 4, %s18
      %p208 = scmp.lt.s32.totalorder %s20, 1
      %s209 = scalar_select %p208, %s20, 1
      %p210 = scmp.lt.s32.totalorder %s207, 3
      %s211 = scalar_select %p210, %s207, 3
      %p212 = scmp.lt.s32.totalorder %s19, 0
      %s213 = scalar_select %p212, %s19, 0
      %s214 = sadd.s32 %s213, %s211
      %s215 = smul.addr %s209, 4
      %s216 = sadd.s32 %s214, %s215
      %s217 = smul.addr %s216, 8
      %s218 = scalar_lea.vmem %s0, %s217
      %s219 = smul.u32 4, %s18
      %s220 = smul.u32 4, %s18
      %p221 = scmp.lt.s32.totalorder %s220, 3
      %s222 = scalar_select %p221, %s220, 3
      %p223 = scmp.lt.s32.totalorder %s19, 0
      %s224 = scalar_select %p223, %s19, 0
      %s225 = sadd.s32 %s224, %s222
      %s226 = smul.addr %s225, 8
      %s227 = scalar_lea.vmem %s1, %s226
      %s228 = smul.u32 4, %s18
      %s229 = smul.u32 4, %s18
      %p230 = scmp.lt.s32.totalorder %s20, 1
      %s231 = scalar_select %p230, %s20, 1
      %p232 = scmp.lt.s32.totalorder %s229, 3
      %s233 = scalar_select %p232, %s229, 3
      %p234 = scmp.lt.s32.totalorder %s19, 0
      %s235 = scalar_select %p234, %s19, 0
      %s236 = sadd.s32 %s235, %s233
      %s237 = smul.addr %s231, 4
      %s238 = sadd.s32 %s236, %s237
      %s239 = smul.addr %s238, 8
      %s240 = scalar_lea.vmem %s2, %s239
      %s241 = smul.u32 4, %s18
      %v242 = vld [vmem:[%s218] sm:$0xff]
      %v243 = vld [vmem:[%s218 + $0x8] sm:$0xff]
      %v244 = vld [vmem:[%s218 + $0x10] sm:$0xff]
      %v245 = vld [vmem:[%s218 + $0x18] sm:$0xff]
      %v246 = vld [vmem:[%s227] sm:$0xff]
      %v247 = vld [vmem:[%s227 + $0x8] sm:$0xff]
      %v248 = vld [vmem:[%s227 + $0x10] sm:$0xff]
      %v249 = vld [vmem:[%s227 + $0x18] sm:$0xff]
      %v250 = vadd.f32 %v242, %v246
      %v251 = vadd.f32 %v243, %v247
      %v252 = vadd.f32 %v244, %v248
      %v253 = vadd.f32 %v245, %v249
      %vm254 = vcmask 64512
      %255 = vst.msk [vmem:[%s240] sm:$0xff] %vm254, %v250
      %256 = vst.msk [vmem:[%s240 + $0x8] sm:$0xff] %vm254, %v251
      %257 = vst.msk [vmem:[%s240 + $0x10] sm:$0xff] %vm254, %v252
      %258 = vst.msk [vmem:[%s240 + $0x18] sm:$0xff] %vm254, %v253
      %s259 = smul.u32 4, %s18
      %p260 = scmp.lt.s32.totalorder %s20, 1
      %s261 = scalar_select %p260, %s20, 1
      %p262 = scmp.lt.s32.totalorder %s259, 3
      %s263 = scalar_select %p262, %s259, 3
      %p264 = scmp.lt.s32.totalorder %s19, 0
      %s265 = scalar_select %p264, %s19, 0
      %s266 = sadd.s32 %s265, %s263
      %s267 = smul.addr %s261, 4
      %s268 = sadd.s32 %s266, %s267
      %s269 = smul.addr %s268, 8
      %s270 = scalar_lea.vmem %s2, %s269
      // Predicated region
      $region29: #{tpu_custom_call.1} parent=27 // pred_check
        %p271 = pneg %p112
      $region30: #{tpu_custom_call.1} parent=27 // pred_check_branch
        %273 = sbr.rel (%p271) target = $region32
      $region31: #{tpu_custom_call.1} parent=27 // pred_region
        %s274 = smul.u32 4, %s18
      $region32: #{tpu_custom_call.1} parent=27 // pred_fallthru
        _
    $region28: #{tpu_custom_call.1} parent=5 // pred_fallthru
      _
    %p275 = scmp.le.s32.totalorder 2, %s8
    // Predicated region
    $region33: #{tpu_custom_call.1} parent=5 // pred_check
      %p276 = pneg %p275
    $region34: #{tpu_custom_call.1} parent=5 // pred_check_branch
      %278 = sbr.rel (%p276) target = $region36
    $region35: #{tpu_custom_call.1} parent=5 // pred_region
      %s279 = ssub.s32 %s8, 2
      // Predicated region
      $region37: #{tpu_custom_call.1} parent=35 // pred_check
        %p280 = pneg %p118
      $region38: #{tpu_custom_call.1} parent=35 // pred_check_branch
        %282 = sbr.rel (%p280) target = $region40
      $region39: #{tpu_custom_call.1} parent=35 // pred_region
        %s283 = smul.u32 4, %s21
        %p284 = scmp.lt.s32.totalorder %s23, 1
        %s285 = scalar_select %p284, %s23, 1
        %p286 = scmp.lt.s32.totalorder %s283, 3
        %s287 = scalar_select %p286, %s283, 3
        %p288 = scmp.lt.s32.totalorder %s22, 0
        %s289 = scalar_select %p288, %s22, 0
        %s290 = sadd.s32 %s289, %s287
        %s291 = smul.addr %s285, 4
        %s292 = sadd.s32 %s290, %s291
        %s293 = smul.addr %s292, 8
        %s294 = scalar_lea.vmem %s2, %s293
      $region40: #{tpu_custom_call.1} parent=35 // pred_fallthru
        _
    $region36: #{tpu_custom_call.1} parent=5 // pred_fallthru
      _
  $region6: #{tpu_custom_call.1} parent=0 // loop_footer
    %s12 = sadd.s32 1, %s8
  $region7: #{tpu_custom_call.1} parent=0 // loop_footer_branch
    %7 = sbr.rel target = $region3
  $region8: #{tpu_custom_call.1} parent=0 // loop_exit
    _

</llo_original>
